<compile_context>
chip_gen: v5e
topology: v5e:2x2
jax: 0.10.0
libtpu: 0.0.40
codegen_flags: <defaults>
</compile_context>

<pallas_src>
import functools

import jax
import jax.numpy as jnp
from jax.experimental import pallas as pl
from jax.experimental.pallas import tpu as pltpu


def _round_up(n, m):
    return ((n + m - 1) // m) * m


def _cdiv(a, b):
    return (a + b - 1) // b


def _sublanes(dtype):
    # f32 packs 8 rows per vreg, bf16 16, int8/fp8 32.
    return max(8, 32 // jnp.dtype(dtype).itemsize)


def _channel_norm_kernel(x_ref, scale_ref, shift_ref, o_ref, *, eps):
    # x block: (bB, C, tT); scale/shift block: (1, C, 1).
    x = x_ref[...].astype(jnp.float32)
    c = x.shape[1]
    mu = jnp.mean(x, axis=1, keepdims=True)                   # (bB, 1, tT)
    diff = x - mu
    # Unbiased variance (ddof=1), matching torch.std default.
    # C == 1 -> NaN, exactly like torch.std(dim=1) on a size-1 dim.
    inv_cm1 = (1.0 / (c - 1)) if c > 1 else float("nan")
    var = jnp.sum(diff * diff, axis=1, keepdims=True) * inv_cm1
    sigma = jnp.sqrt(var) + eps                               # eps AFTER sqrt
    # One exact reciprocal per lane column (EUP slot), then cheap VPU multiplies
    # over the (C, tT) tile instead of a broadcast divide.
    inv = pl.reciprocal(sigma, approx=False)                  # (bB, 1, tT)
    y = diff * inv
    y = y * scale_ref[...].astype(jnp.float32) + shift_ref[...].astype(jnp.float32)
    o_ref[...] = y.astype(o_ref.dtype)


def channel_norm(x, scale, shift, eps=1e-4, target_tile_bytes=2 << 20):
    """x: (B, C, T) float array; scale/shift: (1, C, 1)."""
    B, C, T = x.shape
    itemsize = jnp.dtype(x.dtype).itemsize
    c_pad = _round_up(C, _sublanes(x.dtype))   # sublane-padded C = actual VMEM rows

    # Lane-dense T tile (multiple of 128) sized by a byte budget, not lane count.
    tT = (target_tile_bytes // (c_pad * itemsize)) // 128 * 128
    tT = max(128, min(tT, _round_up(T, 128)))

    # Block several batches per grid step when a single (C, tT) slab is tiny,
    # so each DMA is MiB-scale and per-step overhead (~0.35 us) is amortized.
    per_batch_bytes = c_pad * tT * itemsize
    bB = int(min(B, max(1, target_tile_bytes // per_batch_bytes)))

    grid_b = _cdiv(B, bB)
    grid_t = _cdiv(T, tT)

    # v7x has 2 TensorCores: keep >= 2 parallel grid steps whenever possible.
    if grid_b * grid_t < 2:
        if T > 128:
            tT = max(128, _round_up(_cdiv(T, 2), 128))
            grid_t = _cdiv(T, tT)
        elif bB > 1:
            bB = _cdiv(B, 2)
            grid_b = _cdiv(B, bB)

    # Double-buffered input + output slabs (scale/shift are negligible).
    tile_bytes = bB * c_pad * tT * itemsize
    pipeline_bytes = 2 * 2 * tile_bytes
    compiler_kwargs = dict(dimension_semantics=("parallel", "parallel"))
    if pipeline_bytes > (12 << 20):
        # Exceeds the smallest default scoped-VMEM budget (16 MiB on v5e);
        # 48 MiB still leaves headroom on v7x's 64 MiB physical VMEM.
        # TODO(synk): extremely large C needs a C-tiled two-pass variant; a
        # single-pass channel reduction must hold the full C extent in VMEM.
        compiler_kwargs["vmem_limit_bytes"] = int(
            min(pipeline_bytes + (8 << 20), 48 << 20))

    # Advisory cost hint so XLA can schedule/overlap this bandwidth-heavy call.
    cost = pl.CostEstimate(
        flops=int(7 * B * C * T),
        transcendentals=int(2 * B * T),
        bytes_accessed=int(2 * B * C * T * itemsize
                           + 2 * C * jnp.dtype(scale.dtype).itemsize),
    )

    kernel = functools.partial(_channel_norm_kernel, eps=eps)
    return pl.pallas_call(
        kernel,
        out_shape=jax.ShapeDtypeStruct((B, C, T), x.dtype),
        grid_spec=pltpu.PrefetchScalarGridSpec(
            num_scalar_prefetch=0,
            grid=(grid_b, grid_t),
            in_specs=[
                pl.BlockSpec((bB, C, tT), lambda b, t: (b, 0, t)),
                pl.BlockSpec((1, C, 1), lambda b, t: (0, 0, 0)),
                pl.BlockSpec((1, C, 1), lambda b, t: (0, 0, 0)),
            ],
            out_specs=pl.BlockSpec((bB, C, tT), lambda b, t: (b, 0, t)),
        ),
        compiler_params=pltpu.CompilerParams(**compiler_kwargs),
        cost_estimate=cost,
    )(x, scale, shift)


if __name__ == "__main__":
    B, C, T = 2, 4, 16
    key = jax.random.PRNGKey(0)
    x = jax.random.normal(key, (B, C, T), dtype=jnp.float32)

    # Deterministic parameters, matching nn.Parameter(torch.ones/zeros).
    scale = jnp.ones((1, C, 1), dtype=jnp.float32)
    shift = jnp.zeros((1, C, 1), dtype=jnp.float32)

    out = channel_norm(x, scale, shift, eps=1e-4)
    out = jax.block_until_ready(out)

    # Pure-JAX reference (unbiased std, same as torch.std default).
    mu = jnp.mean(x, axis=1, keepdims=True)
    sigma = jnp.std(x, axis=1, keepdims=True, ddof=1) + 1e-4
    ref = (x - mu) / sigma * scale + shift
    assert out.shape == ref.shape
    assert jnp.allclose(out, ref, atol=1e-5, rtol=1e-5), "mismatch vs reference"

    print("KERNEL_OK")
</pallas_src>

<mosaic_0001>
module attributes {stable_mosaic.version = 11 : i64} {
  func.func @_channel_norm_kernel(%arg0: i32, %arg1: i32, %arg2: memref<1x4x128xf32, #tpu.memory_space<vmem>>, %arg3: memref<1x4x1xf32, #tpu.memory_space<vmem>>, %arg4: memref<1x4x1xf32, #tpu.memory_space<vmem>>, %arg5: memref<1x4x128xf32, #tpu.memory_space<vmem>>) attributes {dimension_semantics = [#tpu.dimension_semantics<parallel>, #tpu.dimension_semantics<parallel>], iteration_bounds = array<i64: 2, 1>, scalar_prefetch = 0 : i64, scratch_operands = 0 : i64, tpu.core_type = #tpu.core_type<tc>, window_params = [{transform_indices = @transform_0, window_bounds = array<i64: 1, 4, 128>}, {pipeline_mode = #tpu.pipeline_mode<synchronous>, transform_indices = @transform_1, window_bounds = array<i64: 1, 4, 1>}, {pipeline_mode = #tpu.pipeline_mode<synchronous>, transform_indices = @transform_2, window_bounds = array<i64: 1, 4, 1>}, {transform_indices = @transform_3, window_bounds = array<i64: 1, 4, 128>}]} {
    %c0 = arith.constant 0 : index
    %c0_0 = arith.constant 0 : index
    %c0_1 = arith.constant 0 : index
    %0 = vector.load %arg2[%c0, %c0_0, %c0_1] : memref<1x4x128xf32, #tpu.memory_space<vmem>>, vector<1x4x128xf32>
    %cst = arith.constant dense<0.000000e+00> : vector<1x128xf32>
    %1 = vector.multi_reduction <add>, %0, %cst [1] : vector<1x4x128xf32> to vector<1x128xf32>
    %2 = vector.shape_cast %1 : vector<1x128xf32> to vector<1x1x128xf32>
    %cst_2 = arith.constant 4.000000e+00 : f32
    %3 = vector.broadcast %cst_2 : f32 to vector<1x1x128xf32>
    %4 = arith.divf %2, %3 : vector<1x1x128xf32>
    %5 = vector.broadcast %4 : vector<1x1x128xf32> to vector<1x4x128xf32>
    %6 = arith.subf %0, %5 : vector<1x4x128xf32>
    %7 = arith.mulf %6, %6 : vector<1x4x128xf32>
    %cst_3 = arith.constant dense<0.000000e+00> : vector<1x128xf32>
    %8 = vector.multi_reduction <add>, %7, %cst_3 [1] : vector<1x4x128xf32> to vector<1x128xf32>
    %9 = vector.shape_cast %8 : vector<1x128xf32> to vector<1x1x128xf32>
    %cst_4 = arith.constant 0.333333343 : f32
    %10 = vector.broadcast %cst_4 : f32 to vector<1x1x128xf32>
    %11 = arith.mulf %9, %10 : vector<1x1x128xf32>
    %12 = math.sqrt %11 : vector<1x1x128xf32>
    %cst_5 = arith.constant 9.99999974E-5 : f32
    %13 = vector.broadcast %cst_5 : f32 to vector<1x1x128xf32>
    %14 = arith.addf %12, %13 : vector<1x1x128xf32>
    %15 = tpu.reciprocal %14 : vector<1x1x128xf32> -> vector<1x1x128xf32>
    %16 = vector.broadcast %15 : vector<1x1x128xf32> to vector<1x4x128xf32>
    %17 = arith.mulf %6, %16 : vector<1x4x128xf32>
    %c0_6 = arith.constant 0 : index
    %c0_7 = arith.constant 0 : index
    %c0_8 = arith.constant 0 : index
    %18 = vector.load %arg3[%c0_6, %c0_7, %c0_8] : memref<1x4x1xf32, #tpu.memory_space<vmem>>, vector<1x4x1xf32>
    %19 = vector.broadcast %18 : vector<1x4x1xf32> to vector<1x4x128xf32>
    %20 = arith.mulf %17, %19 : vector<1x4x128xf32>
    %c0_9 = arith.constant 0 : index
    %c0_10 = arith.constant 0 : index
    %c0_11 = arith.constant 0 : index
    %21 = vector.load %arg4[%c0_9, %c0_10, %c0_11] : memref<1x4x1xf32, #tpu.memory_space<vmem>>, vector<1x4x1xf32>
    %22 = vector.broadcast %21 : vector<1x4x1xf32> to vector<1x4x128xf32>
    %23 = arith.addf %20, %22 : vector<1x4x128xf32>
    %c0_12 = arith.constant 0 : index
    %c0_13 = arith.constant 0 : index
    %c0_14 = arith.constant 0 : index
    %24 = vector.load %arg5[%c0_12, %c0_13, %c0_14] : memref<1x4x128xf32, #tpu.memory_space<vmem>>, vector<1x4x128xf32>
    tpu.vector_store %arg5[%c0_12, %c0_13, %c0_14], %23 {strides = array<i32>} : memref<1x4x128xf32, #tpu.memory_space<vmem>>, vector<1x4x128xf32>,
    return
  }
  func.func @transform_0(%arg0: i32, %arg1: i32) -> (i32, i32, i32) {
    %c0_i32 = arith.constant 0 : i32
    %c0_i32_0 = arith.constant 0 : i32
    return %arg0, %c0_i32, %arg1 : i32, i32, i32
  }
  func.func @transform_1(%arg0: i32, %arg1: i32) -> (i32, i32, i32) {
    %c0_i32 = arith.constant 0 : i32
    %c0_i32_0 = arith.constant 0 : i32
    %c0_i32_1 = arith.constant 0 : i32
    %c0_i32_2 = arith.constant 0 : i32
    return %c0_i32, %c0_i32_0, %c0_i32_1 : i32, i32, i32
  }
  func.func @transform_2(%arg0: i32, %arg1: i32) -> (i32, i32, i32) {
    %c0_i32 = arith.constant 0 : i32
    %c0_i32_0 = arith.constant 0 : i32
    %c0_i32_1 = arith.constant 0 : i32
    %c0_i32_2 = arith.constant 0 : i32
    return %c0_i32, %c0_i32_0, %c0_i32_1 : i32, i32, i32
  }
  func.func @transform_3(%arg0: i32, %arg1: i32) -> (i32, i32, i32) {
    %c0_i32 = arith.constant 0 : i32
    %c0_i32_0 = arith.constant 0 : i32
    return %arg0, %c0_i32, %arg1 : i32, i32, i32
  }
}

</mosaic_0001>

<llo_original>
// kernel: tpu_custom_call.1
$region0: #{tpu_custom_call.1}
  #allocation0 [shape = 'u32[]', space=smem, size = 0x4, offset = 0x4, fixed_abs, tag = 'smem constant byte address 0x4 - core index']
  #allocation1 [shape = 'u32[72,128]{1,0:T(1,128)}', space=vmem, size = 0x9000, scoped, tag = 'internal scratch']
  %s0 = inlined_call_operand.vmem [shape: f32[2,4,16], index: 0, kind: input, shape index: {}]
  %s1 = inlined_call_operand.vmem [shape: f32[1,4,1], index: 1, kind: input, shape index: {}]
  %s2 = inlined_call_operand.vmem [shape: f32[1,4,1], index: 2, kind: input, shape index: {}]
  %s3 = inlined_call_operand.hbm [shape: f32[2,4,16], index: 3, kind: output, shape index: {}]
  %s4 = sld [smem:[#allocation0]]
  $region45: #{tpu_custom_call.1} parent=0
    _
  %s6 = ssub.s32 1, %s4
  %s7 = scalar_select 0, %s6, %s4
  $region1: #{tpu_custom_call.1} parent=0
    #allocation2 [shape = 'u8[4096]{0}', space=vmem, size = 0x1000, scoped, tag = 'output window, operand 0']
    #allocation3 [shape = 's32[2]{0}', space=sflag, size = 0x8, scoped, tag = 'scoped memory for tpu_custom_call.1']
    %8 = vsyncpa [#allocation3], 0
    %s9 = scalar_lea.sflag [#allocation3], 1
    %10 = vsyncpa %s9, 0
    loop: start=0, step=1, limit=4
    $region2: #{tpu_custom_call.1} parent=1 // loop_pre_header
      _
    $region3: #{tpu_custom_call.1} parent=1 // loop_header
      %s12 = sphi 0, %s16
      %p13 = scmp.ge.s32.totalorder %s12, 4
      %s19 = sphi 0, %s31
      %s20 = sphi 0, %s27
      %s21 = sphi 0, %s19
      %s22 = sphi 0, %s20
      %s23 = sphi 0, %s21
      %s24 = sphi 0, %s22
      %s36 = sphi 0, %s38
      %s39 = sphi 0, %s36
      %s40 = sphi 0, %s39
      %s56 = sphi 0, %s40
      %s60 = sphi 0, %s60
      %s62 = sphi 0, %s60
      %s63 = sphi 0, %s62
      %s77 = sphi 0, %s63
      %s81 = sphi 0, %s81
      %s83 = sphi 0, %s81
      %s84 = sphi 0, %s83
      %s98 = sphi 0, %s84
      %s106 = sphi 0, %s108
      %s109 = sphi 0, %s106
      %s110 = sphi 0, %s109
      %s126 = sphi 0, %s110
    $region4: #{tpu_custom_call.1} parent=1 // loop_header_branch
      %15 = sbr.rel (%p13) target = $region8
    $region5: #{tpu_custom_call.1} parent=1 // loop_body
      %s17 = ssub.s32 %s12, 1
      %s18 = ssub.s32 %s12, 2
      %s25 = sadd.s32 1, %s20
      %p26 = scmp.ge.s32.totalorder %s25, 1
      %s27 = scalar_select %p26, 0, %s25
      %s28 = sadd.s32 1, %s19
      %s29 = scalar_select %p26, %s28, %s19
      %p30 = scmp.ge.s32.totalorder %s29, 2
      %s31 = scalar_select %p30, 0, %s29
      %s32 = ssub.s32 %s19, %s31
      %s33 = ssub.s32 %s20, %s27
      %s34 = sor.u32 %s32, %s33
      %p35 = scmp.eq.s32.totalorder %s34, 0
      %s37 = sadd.s32 %s36, 1
      %s38 = scalar_select %p35, %s36, %s37
      %p41 = pneg %p35
      %p42 = scmp.eq.s32.totalorder %s12, 1
      %p43 = por %p41, %p42
      %p44 = scmp.ne.s32.totalorder %s36, %s39
      %p45 = scmp.eq.s32.totalorder %s12, 0
      %p46 = por %p44, %p45
      %p47 = scmp.ne.s32.totalorder %s36, %s39
      %p48 = scmp.eq.s32.totalorder %s17, 1
      %p49 = por %p47, %p48
      %p50 = scmp.ne.s32.totalorder %s39, %s40
      %p51 = scmp.eq.s32.totalorder %s17, 0
      %p52 = por %p50, %p51
      %p53 = scmp.ne.s32.totalorder %s39, %s40
      %p54 = scmp.eq.s32.totalorder %s18, 1
      %p55 = por %p53, %p54
      %p57 = scmp.ne.s32.totalorder %s40, %s56
      %p58 = scmp.eq.s32.totalorder %s18, 0
      %p59 = por %p57, %p58
      %s61 = sadd.s32 %s60, 1
      %p64 = scmp.eq.s32.totalorder %s12, 1
      %p65 = scmp.ne.s32.totalorder %s60, %s62
      %p66 = scmp.eq.s32.totalorder %s12, 0
      %p67 = por %p65, %p66
      %p68 = scmp.ne.s32.totalorder %s60, %s62
      %p69 = scmp.eq.s32.totalorder %s17, 1
      %p70 = por %p68, %p69
      %p71 = scmp.ne.s32.totalorder %s62, %s63
      %p72 = scmp.eq.s32.totalorder %s17, 0
      %p73 = por %p71, %p72
      %p74 = scmp.ne.s32.totalorder %s62, %s63
      %p75 = scmp.eq.s32.totalorder %s18, 1
      %p76 = por %p74, %p75
      %p78 = scmp.ne.s32.totalorder %s63, %s77
      %p79 = scmp.eq.s32.totalorder %s18, 0
      %p80 = por %p78, %p79
      %s82 = sadd.s32 %s81, 1
      %p85 = scmp.eq.s32.totalorder %s12, 1
      %p86 = scmp.ne.s32.totalorder %s81, %s83
      %p87 = scmp.eq.s32.totalorder %s12, 0
      %p88 = por %p86, %p87
      %p89 = scmp.ne.s32.totalorder %s81, %s83
      %p90 = scmp.eq.s32.totalorder %s17, 1
      %p91 = por %p89, %p90
      %p92 = scmp.ne.s32.totalorder %s83, %s84
      %p93 = scmp.eq.s32.totalorder %s17, 0
      %p94 = por %p92, %p93
      %p95 = scmp.ne.s32.totalorder %s83, %s84
      %p96 = scmp.eq.s32.totalorder %s18, 1
      %p97 = por %p95, %p96
      %p99 = scmp.ne.s32.totalorder %s84, %s98
      %p100 = scmp.eq.s32.totalorder %s18, 0
      %p101 = por %p99, %p100
      %s102 = ssub.s32 %s19, %s31
      %s103 = ssub.s32 %s20, %s27
      %s104 = sor.u32 %s102, %s103
      %p105 = scmp.eq.s32.totalorder %s104, 0
      %s107 = sadd.s32 %s106, 1
      %s108 = scalar_select %p105, %s106, %s107
      %p111 = pneg %p105
      %p112 = scmp.eq.s32.totalorder %s12, 1
      %p113 = por %p111, %p112
      %p114 = scmp.ne.s32.totalorder %s106, %s109
      %p115 = scmp.eq.s32.totalorder %s12, 0
      %p116 = por %p114, %p115
      %p117 = scmp.ne.s32.totalorder %s106, %s109
      %p118 = scmp.eq.s32.totalorder %s17, 1
      %p119 = por %p117, %p118
      %p120 = scmp.ne.s32.totalorder %s109, %s110
      %p121 = scmp.eq.s32.totalorder %s17, 0
      %p122 = por %p120, %p121
      %p123 = scmp.ne.s32.totalorder %s109, %s110
      %p124 = scmp.eq.s32.totalorder %s18, 1
      %p125 = por %p123, %p124
      %p127 = scmp.ne.s32.totalorder %s110, %s126
      %p128 = scmp.eq.s32.totalorder %s18, 0
      %p129 = por %p127, %p128
      %p130 = scmp.le.s32.totalorder 1, %s12
      %p131 = scmp.lt.s32.totalorder %s12, 3
      %p132 = pnand %p130, %p131
      %p133 = pneg %p132
      // Predicated region
      $region9: #{tpu_custom_call.1} parent=5 // pred_check
        _
      $region10: #{tpu_custom_call.1} parent=5 // pred_check_branch
        %135 = sbr.rel (%p132) target = $region12
      $region11: #{tpu_custom_call.1} parent=5 // pred_region
        %s136 = ssub.s32 %s12, 1
        // Predicated region
        $region13: #{tpu_custom_call.1} parent=11 // pred_check
          %p137 = pneg %p73
        $region14: #{tpu_custom_call.1} parent=11 // pred_check_branch
          %139 = sbr.rel (%p137) target = $region16
        $region15: #{tpu_custom_call.1} parent=11 // pred_region
          _
        $region16: #{tpu_custom_call.1} parent=11 // pred_fallthru
          _
        // Predicated region
        $region17: #{tpu_custom_call.1} parent=11 // pred_check
          %p140 = pneg %p94
        $region18: #{tpu_custom_call.1} parent=11 // pred_check_branch
          %142 = sbr.rel (%p140) target = $region20
        $region19: #{tpu_custom_call.1} parent=11 // pred_region
          _
        $region20: #{tpu_custom_call.1} parent=11 // pred_fallthru
          _
      $region12: #{tpu_custom_call.1} parent=5 // pred_fallthru
        _
      %p143 = scmp.lt.s32.totalorder %s12, 2
      // Predicated region
      $region21: #{tpu_custom_call.1} parent=5 // pred_check
        %p144 = pneg %p143
      $region22: #{tpu_custom_call.1} parent=5 // pred_check_branch
        %146 = sbr.rel (%p144) target = $region24
      $region23: #{tpu_custom_call.1} parent=5 // pred_region
        // Predicated region
        $region25: #{tpu_custom_call.1} parent=23 // pred_check
          %p147 = pneg %p46
        $region26: #{tpu_custom_call.1} parent=23 // pred_check_branch
          %149 = sbr.rel (%p147) target = $region28
        $region27: #{tpu_custom_call.1} parent=23 // pred_region
          %p150 = scmp.lt.s32.totalorder %s19, 1
          %s151 = scalar_select %p150, %s19, 1
          %p152 = scmp.lt.s32.totalorder %s20, 0
          %s153 = scalar_select %p152, %s20, 0
          %s154 = sadd.s32 %s153, %s151
          %s155 = smul.addr %s154, 4
          %s156 = scalar_lea.vmem %s0, %s155
        $region28: #{tpu_custom_call.1} parent=23 // pred_fallthru
          _
      $region24: #{tpu_custom_call.1} parent=5 // pred_fallthru
        _
      %p157 = scmp.le.s32.totalorder 1, %s12
      %p158 = scmp.lt.s32.totalorder %s12, 3
      %p159 = pnand %p157, %p158
      %p160 = pneg %p159
      // Predicated region
      $region29: #{tpu_custom_call.1} parent=5 // pred_check
        _
      $region30: #{tpu_custom_call.1} parent=5 // pred_check_branch
        %162 = sbr.rel (%p159) target = $region32
      $region31: #{tpu_custom_call.1} parent=5 // pred_region
        %s163 = ssub.s32 %s12, 1
        %p164 = scmp.lt.s32.totalorder %s21, 1
        %s165 = scalar_select %p164, %s21, 1
        %p166 = scmp.lt.s32.totalorder %s22, 0
        %s167 = scalar_select %p166, %s22, 0
        %s168 = sadd.s32 %s167, %s165
        %s169 = smul.addr %s168, 4
        %s170 = scalar_lea.vmem %s0, %s169
        %p171 = pneg %p52
        %p172 = pneg %p49
        %p173 = pneg %p73
        %p174 = pneg %p70
        %p175 = pneg %p94
        %p176 = pneg %p91
        %p177 = pneg %p122
        %p178 = pneg %p119
        %s179 = sand.u32 %s109, 1
        %s180 = scalar_lea.sflag [#allocation3], %s179
        %s181 = sand.u32 %s109, 1
        %s182 = smul.addr %s181, 4
        %s183 = scalar_lea.vmem [#allocation2], %s182
        %p184 = scmp.lt.s32.totalorder %s21, 1
        %s185 = scalar_select %p184, %s21, 1
        %p186 = scmp.lt.s32.totalorder %s22, 0
        %s187 = scalar_select %p186, %s22, 0
        %s188 = sadd.s32 %s187, %s185
        %s189 = smul.addr %s188, 4
        %s190 = scalar_lea.vmem %s0, %s189
        %v191 = vld [vmem:[%s190] sm:$0xf]
        %vm192 = vcmask 1043456
        %v193 = vsel %vm192, %v191, 0.0
        %v194 = vrot.slane %v193, 4
        %v195 = vadd.f32 %v193, %v194
        %v196 = vrot.slane %v195, 2
        %v197 = vadd.f32 %v195, %v196
        %v198 = vrot.slane %v197, 1
        %v199 = vadd.f32 %v197, %v198
        %v200 = vrcp.pop 4.0
        %v201 = vmul.f32 4.0, %v200
        %v202 = vsub.f32 1.0, %v201
        %v203 = vmul.f32 %v200, %v202
        %v204 = vadd.f32 %v200, %v203
        %vm205 = vweird.f32 %v200
        %v206 = vsel %vm205, %v200, %v204
        %v207 = vmul.f32 %v199, %v206
        %v208 = vsub.f32 %v191, %v207
        %v209 = vmul.f32 %v208, %v208
        %v210 = vsel %vm192, %v209, 0.0
        %v211 = vrot.slane %v210, 4
        %v212 = vadd.f32 %v210, %v211
        %v213 = vrot.slane %v212, 2
        %v214 = vadd.f32 %v212, %v213
        %v215 = vrot.slane %v214, 1
        %v216 = vadd.f32 %v214, %v215
        %v217 = vmul.f32 %v216, 0.33333334
        %v218 = vrsqrt.pop %v217
        %v219 = vmul.f32 %v218, %v217
        %v220 = vmul.f32 %v219, %v218
        %v221 = vmul.f32 0.5, %v220
        %v222 = vsub.f32 1.5, %v221
        %v223 = vmul.f32 %v218, %v222
        %v224 = vmul.f32 %v217, %v223
        %vm225 = vcmp.eq.f32.partialorder %v217, inf
        %v226 = vsel %vm225, %v217, %v224
        %vm227 = vcmp.eq.f32.partialorder %v217, 0.0
        %v228 = vand.u32 %v217, 2147483648
        %v229 = vsel %vm227, %v228, %v226
        %v230 = vadd.f32 %v229, 0.0001
        %v231 = vrcp.pop %v230
        %v232 = vmul.f32 %v230, %v231
        %v233 = vsub.f32 1.0, %v232
        %v234 = vmul.f32 %v231, %v233
        %v235 = vadd.f32 %v231, %v234
        %vm236 = vweird.f32 %v230
        %vm237 = vweird.f32 %v231
        %vm238 = vmor %vm236, %vm237
        %v239 = vsel %vm238, %v231, %v235
        %v240 = vand.u32 2147483647, %v230
        %vm241 = vcmp.eq.f32.partialorder %v240, 8.507059e+37
        %v242 = vand.u32 %v230, 2147483648
        %v243 = vor.u32 1.1754944e-38, %v242
        %v244 = vsel %vm241, %v243, %v239
        %v245 = vmul.f32 %v208, %v244
        %v246 = vld [vmem:[%s1] sm:$0xf]
        %248 = vset.pattern.permute.xlu0 0
        %249 = vperm.xlu0 %248, %v246
        %v250 = vpop.permute.xlu0 %249
        %v252 = vmul.f32 %v245, %v250
        %v253 = vld [vmem:[%s2] sm:$0xf]
        %255 = vset.pattern.permute.xlu0 0
        %256 = vperm.xlu0 %255, %v253
        %v257 = vpop.permute.xlu0 %256
        %v259 = vadd.f32 %v252, %v257
        %260 = vst [vmem:[%s183] sm:$0xf] %v259
        %s261 = sand.u32 %s109, 1
        %s262 = scalar_lea.sflag [#allocation3], %s261
        %s263 = sand.u32 %s109, 1
        %s264 = smul.addr %s263, 4
        %s265 = scalar_lea.vmem [#allocation2], %s264
        // Predicated region
        $region33: #{tpu_custom_call.1} parent=31 // pred_check
          %p266 = pneg %p119
        $region34: #{tpu_custom_call.1} parent=31 // pred_check_branch
          %268 = sbr.rel (%p266) target = $region36
        $region35: #{tpu_custom_call.1} parent=31 // pred_region
          %270 = vsyncadd %s262, 0
          %s271 = sadd.s32 %s22, %s21
          %s272 = smul.addr %s271, 4
          %s273 = scalar_lea.hbm %s3, %s272
          %s275 = sshll.u32 %s265, 4
          %s276 = int_to_ptr.vmem [resolvable:$true] %s275
          %s277 = sshll.u32 %s273, 4
          %s278 = int_to_ptr.hbm [resolvable:$true] %s277
          %280 = dma.vmem_to_hbm [thread:$0]  %s276, 64, %s278, %s262
        $region36: #{tpu_custom_call.1} parent=31 // pred_fallthru
          _
      $region32: #{tpu_custom_call.1} parent=5 // pred_fallthru
        _
      %p281 = scmp.le.s32.totalorder 2, %s12
      // Predicated region
      $region37: #{tpu_custom_call.1} parent=5 // pred_check
        %p282 = pneg %p281
      $region38: #{tpu_custom_call.1} parent=5 // pred_check_branch
        %284 = sbr.rel (%p282) target = $region40
      $region39: #{tpu_custom_call.1} parent=5 // pred_region
        %s285 = ssub.s32 %s12, 2
        // Predicated region
        $region41: #{tpu_custom_call.1} parent=39 // pred_check
          %p286 = pneg %p125
        $region42: #{tpu_custom_call.1} parent=39 // pred_check_branch
          %288 = sbr.rel (%p286) target = $region44
        $region43: #{tpu_custom_call.1} parent=39 // pred_region
          %s289 = sand.u32 %s110, 1
          %s290 = scalar_lea.sflag [#allocation3], %s289
          %s291 = sand.u32 %s110, 1
          %s292 = smul.addr %s291, 4
          %s293 = scalar_lea.vmem [#allocation2], %s292
          %295 = dma.done %s290, 64
        $region44: #{tpu_custom_call.1} parent=39 // pred_fallthru
          _
      $region40: #{tpu_custom_call.1} parent=5 // pred_fallthru
        _
    $region6: #{tpu_custom_call.1} parent=1 // loop_footer
      %s16 = sadd.s32 1, %s12
    $region7: #{tpu_custom_call.1} parent=1 // loop_footer_branch
      %11 = sbr.rel target = $region3
    $region8: #{tpu_custom_call.1} parent=1 // loop_exit
      _
    %296 = vsyncpa [#allocation3], 1
    %s297 = scalar_lea.sflag [#allocation3], 1
    %298 = vsyncpa %s297, 1

</llo_original>
